<compile_context>
chip_gen: v6e
topology: v6e:2x2x1
jax: 0.10.0
libtpu: 0.0.40
codegen_flags: <defaults>
</compile_context>

<pallas_src>
import jax
import jax.numpy as jnp
from jax.experimental import pallas as pl
from jax.experimental.pallas import tpu as pltpu


# ----------------------------- Pallas kernel -------------------------------

def _fused_affine_kernel(a_ref, b_ref, c_ref, out_ref):
    """out = a @ b + c  (c broadcasts along the tiled axis).

    Flat orientation       : a=(tile_n, ctx_len)  b=(ctx_len, k*d)   c=(1, k*d)  out=(tile_n, k*d)
    Transposed orientation : a=(k*d, ctx_len)     b=(ctx_len, tile_n) c=(k*d, 1) out=(k*d, tile_n)
    """
    out_ref[...] = (
        jnp.dot(a_ref[...], b_ref[...], preferred_element_type=jnp.float32)
        + c_ref[...]
    )


# --------------------------- tiling heuristics ------------------------------

def _round_up(x: int, m: int) -> int:
    return ((x + m - 1) // m) * m


def _num_tensorcores() -> int:
    """Only v7x has 2 TensorCores per chip; v5e/v6e have 1."""
    try:
        kind = str(getattr(jax.devices()[0], "device_kind", "") or "").lower()
        if "v7" in kind:
            return 2
    except Exception:
        pass
    return 1


def _vmem_budget_bytes() -> int:
    """Conservative per-TensorCore working-set budget that fits every generation."""
    try:
        info = pltpu.get_tpu_info()
        cap = int(getattr(info, "vmem_capacity_bytes", 0) or 0)
        if cap > 0:
            return max(8 << 20, min(cap // 4, 24 << 20))
    except Exception:
        pass
    return 12 << 20  # safe fallback, well under every physical VMEM size


def _plan_flat(n, ctx_len, kd, budget):
    """Row-tiled (n, k*d) output.  Returns (tile_n, working_set_bytes)."""
    ctx_row = _round_up(ctx_len, 128) * 4                 # padded bytes per ctx row
    out_row = _round_up(kd, 128) * 4                      # padded bytes per out row
    per_row = 2 * (ctx_row + out_row)                     # double-buffered in + out
    resident = 2 * 4 * (_round_up(ctx_len, 8) * _round_up(kd, 128)   # beta_tiled
                        + 8 * _round_up(kd, 128))                    # act row
    avail = max(budget - resident, 8 * per_row)
    tile = max(8, (avail // per_row) // 8 * 8)
    cores = _num_tensorcores()
    if cores > 1 and n > 8 * cores:
        # keep >= 4 steps per core so both v7x TensorCores stay load-balanced
        tile = min(tile, max(8, _round_up(pl.cdiv(n, 4 * cores), 8)))
    if tile >= n:
        tile = n                                          # full dim: always legal
    ws = resident + max(tile, 8) * per_row
    return tile, ws


def _plan_transposed(n, ctx_len, kd, budget):
    """Column-tiled (k*d, n) output (n on lanes).  Returns (tile_n, ws_bytes)."""
    ctx_col = _round_up(ctx_len, 8) * 4                   # padded bytes per ctx column
    out_col = _round_up(kd, 8) * 4                        # padded bytes per out column
    per_col = 2 * (ctx_col + out_col)                     # double-buffered in + out
    resident = 2 * 4 * (_round_up(kd, 8) * _round_up(ctx_len, 128)   # beta_tiled^T
                        + _round_up(kd, 8) * 128)                    # act column
    if n <= 128:
        tile = n                                          # full dim: always legal
    else:
        avail = max(budget - resident, 128 * per_col)
        tile = max(128, (avail // per_col) // 128 * 128)
        cores = _num_tensorcores()
        if cores > 1 and n > 128 * cores:
            tile = min(tile, max(128, _round_up(pl.cdiv(n, 4 * cores), 128)))
        if tile >= n:
            tile = n
    ws = resident + max(tile, 128) * per_col
    return tile, ws


# ------------------------------ fused wrapper -------------------------------

def fantasize_rewards(beta: jax.Array, contexts: jax.Array,
                      action_contexts: jax.Array) -> jax.Array:
    """rewards[n,k,d] = contexts[n] @ beta[:ctx_len] + action_contexts[k] @ beta[ctx_len:]
    == einsum('nkc,cd->nkd', concat-features, beta); phis never materialized."""
    n, ctx_len = contexts.shape
    k, act_len = action_contexts.shape
    c, d = beta.shape
    assert c == ctx_len + act_len, f"feature dim mismatch: {c} vs {ctx_len}+{act_len}"
    kd = k * d

    beta_ctx = beta[:ctx_len].astype(jnp.float32)         # (ctx_len, d)
    beta_act = beta[ctx_len:].astype(jnp.float32)         # (act_len, d)
    contexts = contexts.astype(jnp.float32)
    action_contexts = action_contexts.astype(jnp.float32)

    # Grid-invariant arm term, hoisted out of the kernel (one tiny XLA matmul).
    act_term = jnp.dot(action_contexts, beta_act,
                       preferred_element_type=jnp.float32)            # (k, d)

    budget = _vmem_budget_bytes()
    cost = pl.CostEstimate(
        flops=2 * n * ctx_len * kd + n * kd,
        transcendentals=0,
        bytes_accessed=4 * (n * ctx_len + ctx_len * kd + kd + n * kd),
    )

    if kd >= 128:
        # ---- lane-dense flat orientation: output (n, k*d), rows tiled ----
        beta_tiled = jnp.tile(beta_ctx, (1, k))            # (ctx_len, k*d); col kk*d+dd = beta_ctx[:, dd]
        act_row = act_term.reshape(1, kd)                  # (1, k*d)
        tile_n, ws = _plan_flat(n, ctx_len, kd, budget)
        vmem_limit = int(min(max(2 * ws, 32 << 20), 48 << 20))
        out2d = pl.pallas_call(
            _fused_affine_kernel,
            out_shape=jax.ShapeDtypeStruct((n, kd), jnp.float32),
            grid_spec=pltpu.PrefetchScalarGridSpec(
                num_scalar_prefetch=0,
                grid=(pl.cdiv(n, tile_n),),
                in_specs=[
                    pl.BlockSpec((tile_n, ctx_len), lambda i: (i, 0)),   # ctx row tile
                    pl.BlockSpec((ctx_len, kd), lambda i: (0, 0)),       # beta_tiled (resident)
                    pl.BlockSpec((1, kd), lambda i: (0, 0)),             # act row    (resident)
                ],
                out_specs=pl.BlockSpec((tile_n, kd), lambda i: (i, 0)),
            ),
            compiler_params=pltpu.CompilerParams(
                dimension_semantics=("parallel",),
                vmem_limit_bytes=vmem_limit,
            ),
            cost_estimate=cost,
        )(contexts, beta_tiled, act_row)
        return out2d.reshape(n, k, d)

    # ---- k*d < 128: transpose so the large n axis is the lane dimension ----
    beta_tiled_t = jnp.tile(beta_ctx.T, (k, 1))            # (k*d, ctx_len); row kk*d+dd = beta_ctx[:, dd]
    ctx_t = contexts.T                                     # (ctx_len, n)  (layout plumbing)
    act_col = act_term.reshape(kd, 1)                      # (k*d, 1)
    tile_n, ws = _plan_transposed(n, ctx_len, kd, budget)
    vmem_limit = int(min(max(2 * ws, 32 << 20), 48 << 20))
    out_t = pl.pallas_call(
        _fused_affine_kernel,
        out_shape=jax.ShapeDtypeStruct((kd, n), jnp.float32),
        grid_spec=pltpu.PrefetchScalarGridSpec(
            num_scalar_prefetch=0,
            grid=(pl.cdiv(n, tile_n),),
            in_specs=[
                pl.BlockSpec((kd, ctx_len), lambda i: (0, 0)),           # beta_tiled^T (resident)
                pl.BlockSpec((ctx_len, tile_n), lambda i: (0, i)),       # ctx^T column tile
                pl.BlockSpec((kd, 1), lambda i: (0, 0)),                 # act column   (resident)
            ],
            out_specs=pl.BlockSpec((kd, tile_n), lambda i: (0, i)),
        ),
        compiler_params=pltpu.CompilerParams(
            dimension_semantics=("parallel",),
            vmem_limit_bytes=vmem_limit,
        ),
        cost_estimate=cost,
    )(beta_tiled_t, ctx_t, act_col)
    return out_t.T.reshape(n, k, d)


# ----------------------------- LinearAgent ---------------------------------

class LinearAgent:
    """JAX/Pallas port of the PyTorch LinearAgent."""

    def __init__(self, name: str = "linear_agent", use_precision: bool = False):
        self.name = name
        self.use_precision = use_precision

    def train_agent(self, *args, **kwargs):
        pass

    def forward(self, beta, sigma, contexts=None):
        # TODO(synk): PyTorch forward body is `pass` (abstract); nothing to compute.
        return None

    @staticmethod
    def features_all_arms(contexts: jax.Array, action_contexts: jax.Array) -> jax.Array:
        """Fake-model feature map (reference only; fantasize never materializes it):
        phi[n, k] = concat(contexts[n], action_contexts[k])."""
        n = contexts.shape[0]
        k = action_contexts.shape[0]
        ctx = jnp.broadcast_to(contexts[:, None, :], (n, k, contexts.shape[1]))
        act = jnp.broadcast_to(action_contexts[None, :, :], (n, k, action_contexts.shape[1]))
        return jnp.concatenate([ctx, act], axis=-1)

    def fantasize(self, beta: jax.Array, contexts: jax.Array,
                  action_contexts: jax.Array) -> jax.Array:
        # Fused path: einsum('nkc,cd->nkd', features_all_arms(...), beta)
        # without ever writing phis to HBM.
        return fantasize_rewards(beta, contexts, action_contexts)


# ------------------------------- demo / test --------------------------------

if __name__ == "__main__":
    key = jax.random.PRNGKey(0)
    keys = jax.random.split(key, 6)
    agent = LinearAgent(name="linear_agent")

    # Case 1: small module shapes (k*d = 32 < 128 -> transposed lane-dense path).
    n_contexts, n_arms = 8, 4
    context_len, action_len, reward_dim = 16, 16, 8
    contexts = jax.random.normal(keys[0], (n_contexts, context_len), jnp.float32)
    action_contexts = jax.random.normal(keys[1], (n_arms, action_len), jnp.float32)
    beta = jax.random.normal(keys[2], (context_len + action_len, reward_dim), jnp.float32)

    rewards = jax.block_until_ready(agent.fantasize(beta, contexts, action_contexts))
    phis_ref = LinearAgent.features_all_arms(contexts, action_contexts)
    rewards_ref = jnp.einsum("nkc,cd->nkd", phis_ref, beta)
    assert rewards.shape == (n_contexts, n_arms, reward_dim)
    assert jnp.allclose(rewards, rewards_ref, atol=1e-4, rtol=1e-4)

    # Case 2: k*d = 128 -> flat lane-dense path (also verified against einsum).
    n2, arms2, d2 = 16, 4, 32
    contexts2 = jax.random.normal(keys[3], (n2, context_len), jnp.float32)
    action_contexts2 = jax.random.normal(keys[4], (arms2, action_len), jnp.float32)
    beta2 = jax.random.normal(keys[5], (context_len + action_len, d2), jnp.float32)

    rewards2 = jax.block_until_ready(agent.fantasize(beta2, contexts2, action_contexts2))
    phis_ref2 = LinearAgent.features_all_arms(contexts2, action_contexts2)
    rewards_ref2 = jnp.einsum("nkc,cd->nkd", phis_ref2, beta2)
    assert rewards2.shape == (n2, arms2, d2)
    assert jnp.allclose(rewards2, rewards_ref2, atol=1e-4, rtol=1e-4)

    print("KERNEL_OK")
</pallas_src>

<mosaic_0001>
module attributes {stable_mosaic.version = 11 : i64} {
  func.func @_fused_affine_kernel(%arg0: i32, %arg1: memref<32x16xf32, #tpu.memory_space<vmem>>, %arg2: memref<16x8xf32, #tpu.memory_space<vmem>>, %arg3: memref<32x1xf32, #tpu.memory_space<vmem>>, %arg4: memref<32x8xf32, #tpu.memory_space<vmem>>) attributes {dimension_semantics = [#tpu.dimension_semantics<parallel>], iteration_bounds = array<i64: 1>, scalar_prefetch = 0 : i64, scratch_operands = 0 : i64, tpu.core_type = #tpu.core_type<tc>, window_params = [{pipeline_mode = #tpu.pipeline_mode<synchronous>, transform_indices = @transform_0, window_bounds = array<i64: 32, 16>}, {transform_indices = @transform_1, window_bounds = array<i64: 16, 8>}, {pipeline_mode = #tpu.pipeline_mode<synchronous>, transform_indices = @transform_2, window_bounds = array<i64: 32, 1>}, {transform_indices = @transform_3, window_bounds = array<i64: 32, 8>}]} {
    %c0 = arith.constant 0 : index
    %c0_0 = arith.constant 0 : index
    %0 = vector.load %arg1[%c0, %c0_0] : memref<32x16xf32, #tpu.memory_space<vmem>>, vector<32x16xf32>
    %c0_1 = arith.constant 0 : index
    %c0_2 = arith.constant 0 : index
    %1 = vector.load %arg2[%c0_1, %c0_2] : memref<16x8xf32, #tpu.memory_space<vmem>>, vector<16x8xf32>
    %cst = arith.constant dense<0.000000e+00> : vector<32x8xf32>
    %2 = tpu.matmul %0, %1, %cst {dimension_numbers = #tpu.dot_dimension_numbers<[1], [0], [0], [1], [0, 0, 1, 1], [], []>} : vector<32x16xf32>, vector<16x8xf32>, vector<32x8xf32> -> vector<32x8xf32>
    %c0_3 = arith.constant 0 : index
    %c0_4 = arith.constant 0 : index
    %3 = vector.load %arg3[%c0_3, %c0_4] : memref<32x1xf32, #tpu.memory_space<vmem>>, vector<32x1xf32>
    %4 = vector.broadcast %3 : vector<32x1xf32> to vector<32x8xf32>
    %5 = arith.addf %2, %4 : vector<32x8xf32>
    %c0_5 = arith.constant 0 : index
    %c0_6 = arith.constant 0 : index
    %6 = vector.load %arg4[%c0_5, %c0_6] : memref<32x8xf32, #tpu.memory_space<vmem>>, vector<32x8xf32>
    tpu.vector_store %arg4[%c0_5, %c0_6], %5 {strides = array<i32>} : memref<32x8xf32, #tpu.memory_space<vmem>>, vector<32x8xf32>,
    return
  }
  func.func @transform_0(%arg0: i32) -> (i32, i32) {
    %c0_i32 = arith.constant 0 : i32
    %c0_i32_0 = arith.constant 0 : i32
    %c0_i32_1 = arith.constant 0 : i32
    return %c0_i32, %c0_i32_0 : i32, i32
  }
  func.func @transform_1(%arg0: i32) -> (i32, i32) {
    %c0_i32 = arith.constant 0 : i32
    %c0_i32_0 = arith.constant 0 : i32
    return %c0_i32, %arg0 : i32, i32
  }
  func.func @transform_2(%arg0: i32) -> (i32, i32) {
    %c0_i32 = arith.constant 0 : i32
    %c0_i32_0 = arith.constant 0 : i32
    %c0_i32_1 = arith.constant 0 : i32
    return %c0_i32, %c0_i32_0 : i32, i32
  }
  func.func @transform_3(%arg0: i32) -> (i32, i32) {
    %c0_i32 = arith.constant 0 : i32
    %c0_i32_0 = arith.constant 0 : i32
    return %c0_i32, %arg0 : i32, i32
  }
}

</mosaic_0001>

<llo_original>
// kernel: tpu_custom_call.1
$region0: #{tpu_custom_call.1}
  #allocation0 [shape = 'u32[]', space=smem, size = 0x4, offset = 0x4, fixed_abs, tag = 'smem constant byte address 0x4 - core index']
  #allocation1 [shape = 'u32[144,128]{1,0:T(1,128)}', space=vmem, size = 0x12000, scoped, tag = 'internal scratch']
  %s0 = inlined_call_operand.vmem [shape: f32[32,16], index: 0, kind: input, shape index: {}]
  %s1 = inlined_call_operand.vmem [shape: f32[16,8], index: 1, kind: input, shape index: {}]
  %s2 = inlined_call_operand.vmem [shape: f32[32,1], index: 2, kind: input, shape index: {}]
  %s3 = inlined_call_operand.vmem [shape: f32[32,8], index: 3, kind: output, shape index: {}]
  %s4 = sld [smem:[#allocation0]]
  $region22: #{tpu_custom_call.1} parent=0
    _
  %s6 = ssub.s32 1, %s4
  %s7 = scalar_select 0, %s6, %s4
  // Predicated region
  $region2: #{tpu_custom_call.1} parent=0 // pred_check
    _
  $region3: #{tpu_custom_call.1} parent=0 // pred_check_branch
    %9 = sbr.rel (0) target = $region5
  $region4: #{tpu_custom_call.1} parent=0 // pred_region
    _
  $region5: #{tpu_custom_call.1} parent=0 // pred_fallthru
    _
  // Predicated region
  $region6: #{tpu_custom_call.1} parent=0 // pred_check
    _
  $region7: #{tpu_custom_call.1} parent=0 // pred_check_branch
    %11 = sbr.rel (0) target = $region9
  $region8: #{tpu_custom_call.1} parent=0 // pred_region
    _
  $region9: #{tpu_custom_call.1} parent=0 // pred_fallthru
    _
  // Predicated region
  $region10: #{tpu_custom_call.1} parent=0 // pred_check
    _
  $region11: #{tpu_custom_call.1} parent=0 // pred_check_branch
    %13 = sbr.rel (0) target = $region13
  $region12: #{tpu_custom_call.1} parent=0 // pred_region
    _
  $region13: #{tpu_custom_call.1} parent=0 // pred_fallthru
    _
  %v14 = vld [vmem:[%s0] sm:$0xff]
  %v15 = vld [vmem:[%s0 + $0x8] sm:$0xff]
  %v16 = vld [vmem:[%s0 + $0x10] sm:$0xff]
  %v17 = vld [vmem:[%s0 + $0x18] sm:$0xff]
  %v18 = vld [vmem:[%s1] sm:$0xff]
  %v19 = vld [vmem:[%s1 + $0x8] sm:$0xff]
  %v20 = vld [vmem:[%s2] sm:$0xff]
  %v21 = vld [vmem:[%s2 + $0x8] sm:$0xff]
  %v22 = vld [vmem:[%s2 + $0x10] sm:$0xff]
  %v23 = vld [vmem:[%s2 + $0x18] sm:$0xff]
  %25 = vset.pattern.permute.xlu0 0
  %26 = vperm.xlu0 %25, %v20
  %v27 = vpop.permute.xlu0 %26
  %30 = vset.pattern.permute.xlu0 0
  %31 = vperm.xlu0 %30, %v21
  %v32 = vpop.permute.xlu0 %31
  %35 = vset.pattern.permute.xlu0 0
  %36 = vperm.xlu0 %35, %v22
  %v37 = vpop.permute.xlu0 %36
  %40 = vset.pattern.permute.xlu0 0
  %41 = vperm.xlu0 %40, %v23
  %v42 = vpop.permute.xlu0 %41
  %vm44 = vcmask 130048
  %v46 = vsel %vm44, %v14, 0
  %v49 = vsel %vm44, %v15, 0
  %v52 = vsel %vm44, %v16, 0
  %v55 = vsel %vm44, %v17, 0
  %57 = vmatprep.subr.mxu0 0.0
  %58 = vmatpush1.msra.mxu0 0.0
  %59 = vmatprep.subr.mxu0 0.0
  %60 = vmatpush1.msra.mxu0 0.0
  %61 = vmatprep.subr.mxu0 0.0
  %62 = vmatpush1.msra.mxu0 0.0
  %63 = vmatprep.subr.mxu0 0.0
  %64 = vmatpush1.msra.mxu0 0.0
  %65 = vmatprep.subr.mxu0 0.0
  %66 = vmatpush1.msra.mxu0 0.0
  %67 = vmatprep.subr.mxu0 0.0
  %68 = vmatpush1.msra.mxu0 0.0
  %69 = vmatprep.subr.mxu0 0.0
  %70 = vmatpush1.msra.mxu0 0.0
  %71 = vmatprep.subr.mxu0 0.0
  %72 = vmatpush1.msra.mxu0 0.0
  %73 = vmatprep.subr.mxu0 0.0
  %74 = vmatpush1.msra.mxu0 0.0
  %75 = vmatprep.subr.mxu0 0.0
  %76 = vmatpush1.msra.mxu0 0.0
  %77 = vmatprep.subr.mxu0 0.0
  %78 = vmatpush1.msra.mxu0 0.0
  %79 = vmatprep.subr.mxu0 0.0
  %80 = vmatpush1.msra.mxu0 0.0
  %81 = vmatprep.subr.mxu0 0.0
  %82 = vmatpush1.msra.mxu0 0.0
  %83 = vmatprep.subr.mxu0 0.0
  %84 = vmatpush1.msra.mxu0 0.0
  %85 = vmatprep.subr.mxu0 0.0
  %86 = vmatpush1.msra.mxu0 %v19
  %87 = vmatprep.subr.mxu0 0.0
  %88 = vmatpush1.msra.mxu0 %v18
  %89 = vmatprep.subr.mxu0 0.0
  %90 = vmatpush2.msra.mxu0 0.0
  %91 = vmatprep.subr.mxu0 0.0
  %92 = vmatpush2.msra.mxu0 0.0
  %93 = vmatprep.subr.mxu0 0.0
  %94 = vmatpush2.msra.mxu0 0.0
  %95 = vmatprep.subr.mxu0 0.0
  %96 = vmatpush2.msra.mxu0 0.0
  %97 = vmatprep.subr.mxu0 0.0
  %98 = vmatpush2.msra.mxu0 0.0
  %99 = vmatprep.subr.mxu0 0.0
  %100 = vmatpush2.msra.mxu0 0.0
  %101 = vmatprep.subr.mxu0 0.0
  %102 = vmatpush2.msra.mxu0 0.0
  %103 = vmatprep.subr.mxu0 0.0
  %104 = vmatpush2.msra.mxu0 0.0
  %105 = vmatprep.subr.mxu0 0.0
  %106 = vmatpush2.msra.mxu0 0.0
  %107 = vmatprep.subr.mxu0 0.0
  %108 = vmatpush2.msra.mxu0 0.0
  %109 = vmatprep.subr.mxu0 0.0
  %110 = vmatpush2.msra.mxu0 0.0
  %111 = vmatprep.subr.mxu0 0.0
  %112 = vmatpush2.msra.mxu0 0.0
  %113 = vmatprep.subr.mxu0 0.0
  %114 = vmatpush2.msra.mxu0 0.0
  %115 = vmatprep.subr.mxu0 0.0
  %116 = vmatpush2.msra.mxu0 0.0
  %117 = vmatprep.subr.mxu0 0.0
  %118 = vmatpush2.msra.mxu0 0.0
  %119 = vmatprep.subr.mxu0 0.0
  %120 = vmatpush2.msra.mxu0 0.0
  %121 = vmatprep.mubr.f32.mxu0 0.0
  %122 = vmatmul.mubr.f32.gmra.mxu0 %v46
  %v123 = vpop.f32.mrf.mxu0
  %v124 = vadd.f32 %v27, %v123
  %v125 = vpop.f32.mrf.mxu0
  %126 = vmatprep.mubr.f32.mxu0 0.0
  %127 = vmatmul.mubr.f32.gmra.mxu0 %v49
  %v128 = vpop.f32.mrf.mxu0
  %v129 = vadd.f32 %v32, %v128
  %v130 = vpop.f32.mrf.mxu0
  %131 = vmatprep.mubr.f32.mxu0 0.0
  %132 = vmatmul.mubr.f32.gmra.mxu0 %v52
  %v133 = vpop.f32.mrf.mxu0
  %v134 = vadd.f32 %v37, %v133
  %v135 = vpop.f32.mrf.mxu0
  %136 = vmatprep.mubr.f32.mxu0 0.0
  %137 = vmatmul.mubr.f32.gmra.mxu0 %v55
  %v138 = vpop.f32.mrf.mxu0
  %v139 = vadd.f32 %v42, %v138
  %v140 = vpop.f32.mrf.mxu0
  %141 = vdwg.mxu0
  %vm142 = vcmask 64512
  %143 = vst.msk [vmem:[%s3] sm:$0xff] %vm142, %v124
  %144 = vst.msk [vmem:[%s3 + $0x8] sm:$0xff] %vm142, %v129
  %145 = vst.msk [vmem:[%s3 + $0x10] sm:$0xff] %vm142, %v134
  %146 = vst.msk [vmem:[%s3 + $0x18] sm:$0xff] %vm142, %v139
  // Predicated region
  $region14: #{tpu_custom_call.1} parent=0 // pred_check
    _
  $region15: #{tpu_custom_call.1} parent=0 // pred_check_branch
    %148 = sbr.rel (0) target = $region17
  $region16: #{tpu_custom_call.1} parent=0 // pred_region
    _
  $region17: #{tpu_custom_call.1} parent=0 // pred_fallthru
    _
  // Predicated region
  $region18: #{tpu_custom_call.1} parent=0 // pred_check
    _
  $region19: #{tpu_custom_call.1} parent=0 // pred_check_branch
    %150 = sbr.rel (0) target = $region21
  $region20: #{tpu_custom_call.1} parent=0 // pred_region
    _
  $region21: #{tpu_custom_call.1} parent=0 // pred_fallthru
    _

</llo_original>
